<compile_context>
chip_gen: v7x
topology: tpu7x:2x2x1
jax: 0.10.0
libtpu: 0.0.40
codegen_flags: <defaults>
</compile_context>

<pallas_src>
import functools

import jax
import jax.numpy as jnp
from jax.experimental import pallas as pl
from jax.experimental.pallas import tpu as pltpu


def _scorer_kernel(x_ref, y_ref, w1a_ref, w1b_ref, b1_ref, w2_ref, b2_ref, o_ref):
    # lin1: cat([x, y]) @ W1^T + b1, expressed as two K=half matmuls sharing one
    # f32 accumulator (no in-kernel concat -> no extra (TB, D) copy traffic).
    h = jnp.dot(x_ref[...], w1a_ref[...], preferred_element_type=jnp.float32)
    h = h + jnp.dot(y_ref[...], w1b_ref[...], preferred_element_type=jnp.float32)
    h = jnp.tanh(h + b1_ref[...])                                   # (TB, hidden) f32

    # lin2 (out_features == 1): emit logits lane-dense as a (1, TB) row via an
    # MXU dot contracting the hidden axis -> unmasked full-width output stores.
    logit = jax.lax.dot_general(
        w2_ref[...], h,
        dimension_numbers=(((1,), (1,)), ((), ())),
        preferred_element_type=jnp.float32,
    )                                                               # (1, TB)
    logit = logit + b2_ref[0]                                       # SMEM scalar bias
    o_ref[...] = jax.nn.sigmoid(logit).reshape(o_ref.shape)


def prepare_scorer_params(w1, b1, w2, b2, param_dtype=jnp.float32):
    """One-time parameter re-layout (call at load time, NOT per forward).

    PyTorch layouts: w1 (hidden, D), b1 (hidden,), w2 (1, hidden), b2 (1,).
    Kernel layouts:  w1a, w1b (half, hidden) in `param_dtype` (f32 or bf16),
                     b1_row / w2_row (1, hidden) f32, b2_vec (1,) f32 SMEM scalar.
    """
    hidden, D = w1.shape
    half = D // 2
    w1t = jnp.asarray(w1, jnp.float32).T                 # (D, hidden)
    w1a = w1t[:half].astype(param_dtype)                  # x half of W1^T
    w1b = w1t[half:].astype(param_dtype)                  # y half of W1^T
    b1_row = jnp.asarray(b1, jnp.float32).reshape(1, hidden)
    w2_row = jnp.asarray(w2, jnp.float32).reshape(1, hidden)
    b2_vec = jnp.asarray(b2, jnp.float32).reshape(1)
    return w1a, w1b, b1_row, w2_row, b2_vec


@functools.partial(jax.jit, static_argnames=("block_b",))
def scorer_forward(x, y, w1a, w1b, b1_row, w2_row, b2_vec, block_b=2048):
    """x, y: (B, D/2); params from prepare_scorer_params. Returns (B,) float32."""
    B, half = x.shape
    half_w, hidden = w1a.shape
    assert half_w == half and w1b.shape == (half, hidden)
    assert y.shape == (B, half)
    assert b1_row.shape == (1, hidden) and w2_row.shape == (1, hidden)
    assert b2_vec.shape == (1,)

    # MXU-operand dtype follows the weights (bf16 halves HBM read traffic for
    # this memory-bound kernel); biases / activations / accumulation stay f32.
    x = x.astype(w1a.dtype)
    y = y.astype(w1a.dtype)
    itemsize = jnp.dtype(w1a.dtype).itemsize

    # ---- batch-tile selection ------------------------------------------------
    # Cap the tile so the double-buffered x+y input tiles fit a ~16 MiB budget
    # (safe vs v7x's 64 MiB physical VMEM and v5e's scoped defaults).
    tile_budget = 16 * 1024 * 1024
    tb_cap = max(8, (tile_budget // (4 * half * itemsize)) // 8 * 8)
    tb = min(block_b, B, tb_cap)
    if tb < B:
        tb = max(8, (tb // 8) * 8)            # sublane dim: multiple of 8
    elif B >= 1024 and B % 16 == 0:
        tb = B // 2                           # v7x: >=2 grid steps -> both TCs busy
    num_tiles = pl.cdiv(B, tb)

    # Advisory cost hint for XLA scheduling around the custom call.
    D = 2 * half
    cost = pl.CostEstimate(
        flops=2 * B * D * hidden + 2 * B * hidden,
        transcendentals=B * hidden + B,
        bytes_accessed=(B * D * itemsize + B * 4
                        + D * hidden * itemsize + (2 * hidden + 1) * 4),
    )

    out = pl.pallas_call(
        _scorer_kernel,
        out_shape=jax.ShapeDtypeStruct((num_tiles, 1, tb), jnp.float32),
        grid=(num_tiles,),
        in_specs=[
            pl.BlockSpec((tb, half), lambda b: (b, 0)),           # x   (pipelined)
            pl.BlockSpec((tb, half), lambda b: (b, 0)),           # y   (pipelined)
            pl.BlockSpec((half, hidden), lambda b: (0, 0)),       # W1a (VMEM-resident)
            pl.BlockSpec((half, hidden), lambda b: (0, 0)),       # W1b (VMEM-resident)
            pl.BlockSpec((1, hidden), lambda b: (0, 0)),          # b1 row
            pl.BlockSpec((1, hidden), lambda b: (0, 0)),          # w2 row
            pl.BlockSpec(memory_space=pltpu.MemorySpace.SMEM),    # b2 scalar
        ],
        out_specs=pl.BlockSpec((1, 1, tb), lambda b: (b, 0, 0)),  # lane-dense row
        compiler_params=pltpu.CompilerParams(
            dimension_semantics=("parallel",),        # independent batch tiles
            vmem_limit_bytes=32 * 1024 * 1024,
        ),
        cost_estimate=cost,
    )(x, y, w1a, w1b, b1_row, w2_row, b2_vec)

    # (num_tiles, 1, tb) -> flat, drop padded rows of the partial last tile,
    # matching PyTorch's .squeeze(): result shape (B,).
    return out.reshape(num_tiles * tb)[:B]


def reference_forward(x, y, w1, b1, w2, b2):
    xy = jnp.concatenate([x, y], axis=1)
    h = jnp.tanh(xy @ w1.T + b1)
    logit = h @ w2.T + b2
    return jax.nn.sigmoid(logit).reshape(-1)


if __name__ == "__main__":
    # Small shapes consistent with the module (Scorer(input_size=D); x, y are (B, D/2)).
    B = 256
    D = 256
    half = D // 2
    hidden = D // 2

    key = jax.random.PRNGKey(0)
    kx, ky, kw1, kb1, kw2, kb2 = jax.random.split(key, 6)

    x = jax.random.normal(kx, (B, half), dtype=jnp.float32)
    y = jax.random.normal(ky, (B, half), dtype=jnp.float32)

    # Deterministic params (PyTorch Linear layout: weight = (out, in)).
    bound1 = 1.0 / (D ** 0.5)
    w1 = jax.random.uniform(kw1, (hidden, D), minval=-bound1, maxval=bound1,
                            dtype=jnp.float32)
    b1 = jax.random.uniform(kb1, (hidden,), minval=-bound1, maxval=bound1,
                            dtype=jnp.float32)
    bound2 = 1.0 / (hidden ** 0.5)
    w2 = jax.random.uniform(kw2, (1, hidden), minval=-bound2, maxval=bound2,
                            dtype=jnp.float32)
    b2 = jax.random.uniform(kb2, (1,), minval=-bound2, maxval=bound2,
                            dtype=jnp.float32)

    ref = reference_forward(x, y, w1, b1, w2, b2)

    # --- f32 path: single-block fast path (grid=(1,)) ---
    params_f32 = prepare_scorer_params(w1, b1, w2, b2)
    out_single = jax.block_until_ready(scorer_forward(x, y, *params_f32))
    assert out_single.shape == (B,)
    assert jnp.allclose(out_single, ref, atol=2e-5, rtol=2e-5)

    # --- f32 path: tiled, pipelined grid with a partial last tile ---
    out_tiled = jax.block_until_ready(scorer_forward(x, y, *params_f32, block_b=96))
    assert out_tiled.shape == (B,)
    assert jnp.allclose(out_tiled, ref, atol=2e-5, rtol=2e-5)

    # --- bf16 MXU-operand path (memory-bound win; looser tolerance by design) ---
    params_bf16 = prepare_scorer_params(w1, b1, w2, b2, param_dtype=jnp.bfloat16)
    out_bf16 = jax.block_until_ready(scorer_forward(x, y, *params_bf16))
    assert out_bf16.shape == (B,)
    assert jnp.allclose(out_bf16, ref, atol=3e-2, rtol=3e-2)

    print("KERNEL_OK")
</pallas_src>

<mosaic_0001>
module attributes {stable_mosaic.version = 11 : i64} {
  func.func @_scorer_kernel(%arg0: i32, %arg1: memref<256x128xf32, #tpu.memory_space<vmem>>, %arg2: memref<256x128xf32, #tpu.memory_space<vmem>>, %arg3: memref<128x128xf32, #tpu.memory_space<vmem>>, %arg4: memref<128x128xf32, #tpu.memory_space<vmem>>, %arg5: memref<1x128xf32, #tpu.memory_space<vmem>>, %arg6: memref<1x128xf32, #tpu.memory_space<vmem>>, %arg7: memref<1xf32, #tpu.memory_space<smem>>, %arg8: memref<1x1x256xf32, #tpu.memory_space<vmem>>) attributes {dimension_semantics = [#tpu.dimension_semantics<parallel>], iteration_bounds = array<i64: 1>, scalar_prefetch = 0 : i64, scratch_operands = 0 : i64, tpu.core_type = #tpu.core_type<tc>, window_params = [{transform_indices = @transform_0, window_bounds = array<i64: 256, 128>}, {transform_indices = @transform_1, window_bounds = array<i64: 256, 128>}, {pipeline_mode = #tpu.pipeline_mode<synchronous>, transform_indices = @transform_2, window_bounds = array<i64: 128, 128>}, {pipeline_mode = #tpu.pipeline_mode<synchronous>, transform_indices = @transform_3, window_bounds = array<i64: 128, 128>}, {pipeline_mode = #tpu.pipeline_mode<synchronous>, transform_indices = @transform_4, window_bounds = array<i64: 1, 128>}, {pipeline_mode = #tpu.pipeline_mode<synchronous>, transform_indices = @transform_5, window_bounds = array<i64: 1, 128>}, {transform_indices = @transform_6, window_bounds = array<i64: 1>}, {transform_indices = @transform_7, window_bounds = array<i64: 1, 1, 256>}]} {
    %c0 = arith.constant 0 : index
    %c0_0 = arith.constant 0 : index
    %0 = vector.load %arg1[%c0, %c0_0] : memref<256x128xf32, #tpu.memory_space<vmem>>, vector<256x128xf32>
    %c0_1 = arith.constant 0 : index
    %c0_2 = arith.constant 0 : index
    %1 = vector.load %arg3[%c0_1, %c0_2] : memref<128x128xf32, #tpu.memory_space<vmem>>, vector<128x128xf32>
    %cst = arith.constant dense<0.000000e+00> : vector<256x128xf32>
    %2 = tpu.matmul %0, %1, %cst {dimension_numbers = #tpu.dot_dimension_numbers<[1], [0], [0], [1], [0, 0, 1, 1], [], []>} : vector<256x128xf32>, vector<128x128xf32>, vector<256x128xf32> -> vector<256x128xf32>
    %c0_3 = arith.constant 0 : index
    %c0_4 = arith.constant 0 : index
    %3 = vector.load %arg2[%c0_3, %c0_4] : memref<256x128xf32, #tpu.memory_space<vmem>>, vector<256x128xf32>
    %c0_5 = arith.constant 0 : index
    %c0_6 = arith.constant 0 : index
    %4 = vector.load %arg4[%c0_5, %c0_6] : memref<128x128xf32, #tpu.memory_space<vmem>>, vector<128x128xf32>
    %cst_7 = arith.constant dense<0.000000e+00> : vector<256x128xf32>
    %5 = tpu.matmul %3, %4, %cst_7 {dimension_numbers = #tpu.dot_dimension_numbers<[1], [0], [0], [1], [0, 0, 1, 1], [], []>} : vector<256x128xf32>, vector<128x128xf32>, vector<256x128xf32> -> vector<256x128xf32>
    %6 = arith.addf %2, %5 : vector<256x128xf32>
    %c0_8 = arith.constant 0 : index
    %c0_9 = arith.constant 0 : index
    %7 = vector.load %arg5[%c0_8, %c0_9] : memref<1x128xf32, #tpu.memory_space<vmem>>, vector<1x128xf32>
    %8 = vector.broadcast %7 : vector<1x128xf32> to vector<256x128xf32>
    %9 = arith.addf %6, %8 : vector<256x128xf32>
    %10 = math.tanh %9 : vector<256x128xf32>
    %c0_10 = arith.constant 0 : index
    %c0_11 = arith.constant 0 : index
    %11 = vector.load %arg6[%c0_10, %c0_11] : memref<1x128xf32, #tpu.memory_space<vmem>>, vector<1x128xf32>
    %cst_12 = arith.constant dense<0.000000e+00> : vector<1x256xf32>
    %12 = tpu.matmul %11, %10, %cst_12 {dimension_numbers = #tpu.dot_dimension_numbers<[1], [1], [0], [0], [0, 0, 1, 0], [], []>} : vector<1x128xf32>, vector<256x128xf32>, vector<1x256xf32> -> vector<1x256xf32>
    %c0_13 = arith.constant 0 : index
    %13 = memref.load %arg7[%c0_13] : memref<1xf32, #tpu.memory_space<smem>>
    %14 = vector.broadcast %13 : f32 to vector<1x256xf32>
    %15 = arith.addf %12, %14 : vector<1x256xf32>
    %16 = arith.negf %15 : vector<1x256xf32>
    %17 = math.exp %16 : vector<1x256xf32>
    %cst_14 = arith.constant 1.000000e+00 : f32
    %18 = vector.broadcast %cst_14 : f32 to vector<1x256xf32>
    %19 = arith.addf %18, %17 : vector<1x256xf32>
    %20 = arith.divf %18, %19 : vector<1x256xf32>
    %21 = vector.shape_cast %20 : vector<1x256xf32> to vector<1x1x256xf32>
    %c0_15 = arith.constant 0 : index
    %c0_16 = arith.constant 0 : index
    %c0_17 = arith.constant 0 : index
    %22 = vector.load %arg8[%c0_15, %c0_16, %c0_17] : memref<1x1x256xf32, #tpu.memory_space<vmem>>, vector<1x1x256xf32>
    tpu.vector_store %arg8[%c0_15, %c0_16, %c0_17], %21 {strides = array<i32>} : memref<1x1x256xf32, #tpu.memory_space<vmem>>, vector<1x1x256xf32>,
    return
  }
  func.func @transform_0(%arg0: i32) -> (i32, i32) {
    %c0_i32 = arith.constant 0 : i32
    %c0_i32_0 = arith.constant 0 : i32
    return %arg0, %c0_i32 : i32, i32
  }
  func.func @transform_1(%arg0: i32) -> (i32, i32) {
    %c0_i32 = arith.constant 0 : i32
    %c0_i32_0 = arith.constant 0 : i32
    return %arg0, %c0_i32 : i32, i32
  }
  func.func @transform_2(%arg0: i32) -> (i32, i32) {
    %c0_i32 = arith.constant 0 : i32
    %c0_i32_0 = arith.constant 0 : i32
    %c0_i32_1 = arith.constant 0 : i32
    return %c0_i32, %c0_i32_0 : i32, i32
  }
  func.func @transform_3(%arg0: i32) -> (i32, i32) {
    %c0_i32 = arith.constant 0 : i32
    %c0_i32_0 = arith.constant 0 : i32
    %c0_i32_1 = arith.constant 0 : i32
    return %c0_i32, %c0_i32_0 : i32, i32
  }
  func.func @transform_4(%arg0: i32) -> (i32, i32) {
    %c0_i32 = arith.constant 0 : i32
    %c0_i32_0 = arith.constant 0 : i32
    %c0_i32_1 = arith.constant 0 : i32
    return %c0_i32, %c0_i32_0 : i32, i32
  }
  func.func @transform_5(%arg0: i32) -> (i32, i32) {
    %c0_i32 = arith.constant 0 : i32
    %c0_i32_0 = arith.constant 0 : i32
    %c0_i32_1 = arith.constant 0 : i32
    return %c0_i32, %c0_i32_0 : i32, i32
  }
  func.func @transform_6(%arg0: i32) -> i32 {
    %c0_i32 = arith.constant 0 : i32
    %c0_i32_0 = arith.constant 0 : i32
    return %c0_i32 : i32
  }
  func.func @transform_7(%arg0: i32) -> (i32, i32, i32) {
    %c0_i32 = arith.constant 0 : i32
    %c0_i32_0 = arith.constant 0 : i32
    %c0_i32_1 = arith.constant 0 : i32
    return %arg0, %c0_i32, %c0_i32_0 : i32, i32, i32
  }
}

</mosaic_0001>

<llo_original>
// kernel: scorer_forward.1
$region0: #{scorer_forward.1}
  #allocation0 [shape = 'u32[]', space=smem, size = 0x4, offset = 0x4, fixed_abs, tag = 'smem constant byte address 0x4 - core index']
  #allocation1 [shape = 'u32[144,128]{1,0:T(1,128)}', space=vmem, size = 0x12000, scoped, tag = 'internal scratch']
  #allocation2 [shape = 'f32[1]{0:T(128)S(6)}', space=smem, size = 0x200, scoped, tag = 'scoped memory for scorer_forward.1']
  %s0 = inlined_call_operand.hbm [shape: f32[256,128], index: 0, kind: input, shape index: {}]
  %s1 = inlined_call_operand.hbm [shape: f32[256,128], index: 1, kind: input, shape index: {}]
  %s2 = inlined_call_operand.hbm [shape: f32[128,128], index: 2, kind: input, shape index: {}]
  %s3 = inlined_call_operand.hbm [shape: f32[128,128], index: 3, kind: input, shape index: {}]
  %s4 = inlined_call_operand.vmem [shape: f32[1,128], index: 4, kind: input, shape index: {}]
  %s5 = inlined_call_operand.vmem [shape: f32[1,128], index: 5, kind: input, shape index: {}]
  %s6 = inlined_call_operand.<no memory space> [shape: f32[1], index: 6, kind: input, shape index: {}]
  %s7 = inlined_call_operand.hbm [shape: f32[1,1,256], index: 7, kind: output, shape index: {}]
  %s8 = sld [smem:[#allocation0]]
  $region54: #{scorer_forward.1} parent=0
    _
  %s10 = ssub.s32 1, %s8
  %s11 = scalar_select 0, %s10, %s8
  %12 = sst [smem:[#allocation2]] %s6
  $region1: #{scorer_forward.1} parent=0
    #allocation3 [shape = 'u8[131072]{0}', space=vmem, size = 0x20000, scoped, tag = 'input window, operand 0, single buffered']
    #allocation4 [shape = 's32[1]{0}', space=sflag, size = 0x4, scoped, tag = 'scoped memory for scorer_forward.1']
    #allocation5 [shape = 's32[1]{0}', space=sflag, size = 0x4, scoped, tag = 'scoped memory for scorer_forward.1']
    #allocation6 [shape = 'u8[131072]{0}', space=vmem, size = 0x20000, scoped, tag = 'input window, operand 1, single buffered']
    #allocation7 [shape = 's32[1]{0}', space=sflag, size = 0x4, scoped, tag = 'scoped memory for scorer_forward.1']
    #allocation8 [shape = 'u8[65536]{0}', space=vmem, size = 0x10000, scoped, tag = 'input window, operand 2, single buffered']
    #allocation9 [shape = 'u8[65536]{0}', space=vmem, size = 0x10000, scoped, tag = 'input window, operand 3, single buffered']
    #allocation10 [shape = 's32[1]{0}', space=sflag, size = 0x4, scoped, tag = 'scoped memory for scorer_forward.1']
    #allocation11 [shape = 'u8[1024]{0}', space=vmem, size = 0x400, scoped, tag = 'output window, operand 0, single buffered']
    %13 = vsyncpa [#allocation4], 0
    %14 = vsyncpa [#allocation7], 0
    %15 = vsyncpa [#allocation10], 0
    %16 = vsyncpa [#allocation5], 0
    // Predicated region
    $region2: #{scorer_forward.1} parent=1 // pred_check
      _
    $region3: #{scorer_forward.1} parent=1 // pred_check_branch
      %18 = sbr.rel (0) target = $region5
    $region4: #{scorer_forward.1} parent=1 // pred_region
      %s20 = ssub.s32 4096, 4096
      %21 = vsyncadd [#allocation4], %s20
      %s22 = sshll.u32 [#allocation3], 4
      %s23 = int_to_ptr.vmem [resolvable:$true] %s22
      %28 = dma.hbm_to_vmem [thread:$0]  %s0, 4096, %s23, [#allocation4], 128, 128, 8
    $region5: #{scorer_forward.1} parent=1 // pred_fallthru
      _
    // Predicated region
    $region6: #{scorer_forward.1} parent=1 // pred_check
      _
    $region7: #{scorer_forward.1} parent=1 // pred_check_branch
      %30 = sbr.rel (0) target = $region9
    $region8: #{scorer_forward.1} parent=1 // pred_region
      %s32 = ssub.s32 4096, 4096
      %33 = vsyncadd [#allocation7], %s32
      %s34 = sshll.u32 [#allocation6], 4
      %s35 = int_to_ptr.vmem [resolvable:$true] %s34
      %40 = dma.hbm_to_vmem [thread:$0]  %s1, 4096, %s35, [#allocation7], 128, 128, 8
    $region9: #{scorer_forward.1} parent=1 // pred_fallthru
      _
    // Predicated region
    $region10: #{scorer_forward.1} parent=1 // pred_check
      _
    $region11: #{scorer_forward.1} parent=1 // pred_check_branch
      %42 = sbr.rel (0) target = $region13
    $region12: #{scorer_forward.1} parent=1 // pred_region
      %s44 = ssub.s32 2048, 2048
      %45 = vsyncadd [#allocation7], %s44
      %s46 = sshll.u32 [#allocation8], 4
      %s47 = int_to_ptr.vmem [resolvable:$true] %s46
      %52 = dma.hbm_to_vmem [thread:$0]  %s2, 2048, %s47, [#allocation7], 128, 128, 8
    $region13: #{scorer_forward.1} parent=1 // pred_fallthru
      _
    // Predicated region
    $region14: #{scorer_forward.1} parent=1 // pred_check
      _
    $region15: #{scorer_forward.1} parent=1 // pred_check_branch
      %54 = sbr.rel (0) target = $region17
    $region16: #{scorer_forward.1} parent=1 // pred_region
      %s56 = ssub.s32 2048, 2048
      %57 = vsyncadd [#allocation10], %s56
      %s58 = sshll.u32 [#allocation9], 4
      %s59 = int_to_ptr.vmem [resolvable:$true] %s58
      %64 = dma.hbm_to_vmem [thread:$0]  %s3, 2048, %s59, [#allocation10], 128, 128, 8
    $region17: #{scorer_forward.1} parent=1 // pred_fallthru
      _
    // Predicated region
    $region18: #{scorer_forward.1} parent=1 // pred_check
      _
    $region19: #{scorer_forward.1} parent=1 // pred_check_branch
      %66 = sbr.rel (0) target = $region21
    $region20: #{scorer_forward.1} parent=1 // pred_region
      _
    $region21: #{scorer_forward.1} parent=1 // pred_fallthru
      _
    // Predicated region
    $region22: #{scorer_forward.1} parent=1 // pred_check
      _
    $region23: #{scorer_forward.1} parent=1 // pred_check_branch
      %68 = sbr.rel (0) target = $region25
    $region24: #{scorer_forward.1} parent=1 // pred_region
      _
    $region25: #{scorer_forward.1} parent=1 // pred_fallthru
      _
    // Predicated region
    $region26: #{scorer_forward.1} parent=1 // pred_check
      _
    $region27: #{scorer_forward.1} parent=1 // pred_check_branch
      %70 = sbr.rel (0) target = $region29
    $region28: #{scorer_forward.1} parent=1 // pred_region
      _
    $region29: #{scorer_forward.1} parent=1 // pred_fallthru
      _
    // Predicated region
    $region30: #{scorer_forward.1} parent=1 // pred_check
      _
    $region31: #{scorer_forward.1} parent=1 // pred_check_branch
      %72 = sbr.rel (0) target = $region33
    $region32: #{scorer_forward.1} parent=1 // pred_region
      %73 = dma.done [#allocation4], 4096
    $region33: #{scorer_forward.1} parent=1 // pred_fallthru
      _
    // Predicated region
    $region34: #{scorer_forward.1} parent=1 // pred_check
      _
    $region35: #{scorer_forward.1} parent=1 // pred_check_branch
      %75 = sbr.rel (0) target = $region37
    $region36: #{scorer_forward.1} parent=1 // pred_region
      %76 = dma.done [#allocation7], 4096
    $region37: #{scorer_forward.1} parent=1 // pred_fallthru
      _
    // Predicated region
    $region38: #{scorer_forward.1} parent=1 // pred_check
      _
    $region39: #{scorer_forward.1} parent=1 // pred_check_branch
      %78 = sbr.rel (0) target = $region41
    $region40: #{scorer_forward.1} parent=1 // pred_region
      %79 = dma.done [#allocation7], 2048
    $region41: #{scorer_forward.1} parent=1 // pred_fallthru
      _
    // Predicated region
    $region42: #{scorer_forward.1} parent=1 // pred_check
      _
    $region43: #{scorer_forward.1} parent=1 // pred_check_branch
      %81 = sbr.rel (0) target = $region45
    $region44: #{scorer_forward.1} parent=1 // pred_region
      %82 = dma.done [#allocation10], 2048
    $region45: #{scorer_forward.1} parent=1 // pred_fallthru
      _
    %v83 = vld [vmem:[#allocation3] sm:$0xff]
    %v84 = vld [vmem:[#allocation3 + $0x8] sm:$0xff]
    %v85 = vld [vmem:[#allocation3 + $0x10] sm:$0xff]
    %v86 = vld [vmem:[#allocation3 + $0x18] sm:$0xff]
    %v87 = vld [vmem:[#allocation3 + $0x20] sm:$0xff]
    %v88 = vld [vmem:[#allocation3 + $0x28] sm:$0xff]
    %v89 = vld [vmem:[#allocation3 + $0x30] sm:$0xff]
    %v90 = vld [vmem:[#allocation3 + $0x38] sm:$0xff]
    %v91 = vld [vmem:[#allocation3 + $0x40] sm:$0xff]
    %v92 = vld [vmem:[#allocation3 + $0x48] sm:$0xff]
    %v93 = vld [vmem:[#allocation3 + $0x50] sm:$0xff]
    %v94 = vld [vmem:[#allocation3 + $0x58] sm:$0xff]
    %v95 = vld [vmem:[#allocation3 + $0x60] sm:$0xff]
    %v96 = vld [vmem:[#allocation3 + $0x68] sm:$0xff]
    %v97 = vld [vmem:[#allocation3 + $0x70] sm:$0xff]
    %v98 = vld [vmem:[#allocation3 + $0x78] sm:$0xff]
    %v99 = vld [vmem:[#allocation3 + $0x80] sm:$0xff]
    %v100 = vld [vmem:[#allocation3 + $0x88] sm:$0xff]
    %v101 = vld [vmem:[#allocation3 + $0x90] sm:$0xff]
    %v102 = vld [vmem:[#allocation3 + $0x98] sm:$0xff]
    %v103 = vld [vmem:[#allocation3 + $0xa0] sm:$0xff]
    %v104 = vld [vmem:[#allocation3 + $0xa8] sm:$0xff]
    %v105 = vld [vmem:[#allocation3 + $0xb0] sm:$0xff]
    %v106 = vld [vmem:[#allocation3 + $0xb8] sm:$0xff]
    %v107 = vld [vmem:[#allocation3 + $0xc0] sm:$0xff]
    %v108 = vld [vmem:[#allocation3 + $0xc8] sm:$0xff]
    %v109 = vld [vmem:[#allocation3 + $0xd0] sm:$0xff]
    %v110 = vld [vmem:[#allocation3 + $0xd8] sm:$0xff]
    %v111 = vld [vmem:[#allocation3 + $0xe0] sm:$0xff]
    %v112 = vld [vmem:[#allocation3 + $0xe8] sm:$0xff]
    %v113 = vld [vmem:[#allocation3 + $0xf0] sm:$0xff]
    %v114 = vld [vmem:[#allocation3 + $0xf8] sm:$0xff]
    %v115 = vld [vmem:[#allocation8] sm:$0xff]
    %v116 = vld [vmem:[#allocation8 + $0x8] sm:$0xff]
    %v117 = vld [vmem:[#allocation8 + $0x10] sm:$0xff]
    %v118 = vld [vmem:[#allocation8 + $0x18] sm:$0xff]
    %v119 = vld [vmem:[#allocation8 + $0x20] sm:$0xff]
    %v120 = vld [vmem:[#allocation8 + $0x28] sm:$0xff]
    %v121 = vld [vmem:[#allocation8 + $0x30] sm:$0xff]
    %v122 = vld [vmem:[#allocation8 + $0x38] sm:$0xff]
    %v123 = vld [vmem:[#allocation8 + $0x40] sm:$0xff]
    %v124 = vld [vmem:[#allocation8 + $0x48] sm:$0xff]
    %v125 = vld [vmem:[#allocation8 + $0x50] sm:$0xff]
    %v126 = vld [vmem:[#allocation8 + $0x58] sm:$0xff]
    %v127 = vld [vmem:[#allocation8 + $0x60] sm:$0xff]
    %v128 = vld [vmem:[#allocation8 + $0x68] sm:$0xff]
    %v129 = vld [vmem:[#allocation8 + $0x70] sm:$0xff]
    %v130 = vld [vmem:[#allocation8 + $0x78] sm:$0xff]
    %v131 = vld [vmem:[#allocation6] sm:$0xff]
    %v132 = vld [vmem:[#allocation6 + $0x8] sm:$0xff]
    %v133 = vld [vmem:[#allocation6 + $0x10] sm:$0xff]
    %v134 = vld [vmem:[#allocation6 + $0x18] sm:$0xff]
    %v135 = vld [vmem:[#allocation6 + $0x20] sm:$0xff]
    %v136 = vld [vmem:[#allocation6 + $0x28] sm:$0xff]
    %v137 = vld [vmem:[#allocation6 + $0x30] sm:$0xff]
    %v138 = vld [vmem:[#allocation6 + $0x38] sm:$0xff]
    %v139 = vld [vmem:[#allocation6 + $0x40] sm:$0xff]
    %v140 = vld [vmem:[#allocation6 + $0x48] sm:$0xff]
    %v141 = vld [vmem:[#allocation6 + $0x50] sm:$0xff]
    %v142 = vld [vmem:[#allocation6 + $0x58] sm:$0xff]
    %v143 = vld [vmem:[#allocation6 + $0x60] sm:$0xff]
    %v144 = vld [vmem:[#allocation6 + $0x68] sm:$0xff]
    %v145 = vld [vmem:[#allocation6 + $0x70] sm:$0xff]
    %v146 = vld [vmem:[#allocation6 + $0x78] sm:$0xff]
    %v147 = vld [vmem:[#allocation6 + $0x80] sm:$0xff]
    %v148 = vld [vmem:[#allocation6 + $0x88] sm:$0xff]
    %v149 = vld [vmem:[#allocation6 + $0x90] sm:$0xff]
    %v150 = vld [vmem:[#allocation6 + $0x98] sm:$0xff]
    %v151 = vld [vmem:[#allocation6 + $0xa0] sm:$0xff]
    %v152 = vld [vmem:[#allocation6 + $0xa8] sm:$0xff]
    %v153 = vld [vmem:[#allocation6 + $0xb0] sm:$0xff]
    %v154 = vld [vmem:[#allocation6 + $0xb8] sm:$0xff]
    %v155 = vld [vmem:[#allocation6 + $0xc0] sm:$0xff]
    %v156 = vld [vmem:[#allocation6 + $0xc8] sm:$0xff]
    %v157 = vld [vmem:[#allocation6 + $0xd0] sm:$0xff]
    %v158 = vld [vmem:[#allocation6 + $0xd8] sm:$0xff]
    %v159 = vld [vmem:[#allocation6 + $0xe0] sm:$0xff]
    %v160 = vld [vmem:[#allocation6 + $0xe8] sm:$0xff]
    %v161 = vld [vmem:[#allocation6 + $0xf0] sm:$0xff]
    %v162 = vld [vmem:[#allocation6 + $0xf8] sm:$0xff]
    %v163 = vld [vmem:[#allocation9] sm:$0xff]
    %v164 = vld [vmem:[#allocation9 + $0x8] sm:$0xff]
    %v165 = vld [vmem:[#allocation9 + $0x10] sm:$0xff]
    %v166 = vld [vmem:[#allocation9 + $0x18] sm:$0xff]
    %v167 = vld [vmem:[#allocation9 + $0x20] sm:$0xff]
    %v168 = vld [vmem:[#allocation9 + $0x28] sm:$0xff]
    %v169 = vld [vmem:[#allocation9 + $0x30] sm:$0xff]
    %v170 = vld [vmem:[#allocation9 + $0x38] sm:$0xff]
    %v171 = vld [vmem:[#allocation9 + $0x40] sm:$0xff]
    %v172 = vld [vmem:[#allocation9 + $0x48] sm:$0xff]
    %v173 = vld [vmem:[#allocation9 + $0x50] sm:$0xff]
    %v174 = vld [vmem:[#allocation9 + $0x58] sm:$0xff]
    %v175 = vld [vmem:[#allocation9 + $0x60] sm:$0xff]
    %v176 = vld [vmem:[#allocation9 + $0x68] sm:$0xff]
    %v177 = vld [vmem:[#allocation9 + $0x70] sm:$0xff]
    %v178 = vld [vmem:[#allocation9 + $0x78] sm:$0xff]
    %179 = vmatprep.subr.mxu0 0.0
    %180 = vmatpush1.msra.mxu0 %v163
    %181 = vmatprep.subr.mxu0 0.0
    %182 = vmatpush1.msra.mxu0 %v164
    %183 = vmatprep.subr.mxu0 0.0
    %184 = vmatpush1.msra.mxu0 %v165
    %185 = vmatprep.subr.mxu0 0.0
    %186 = vmatpush1.msra.mxu0 %v166
    %187 = vmatprep.subr.mxu0 0.0
    %188 = vmatpush1.msra.mxu0 %v167
    %189 = vmatprep.subr.mxu0 0.0
    %190 = vmatpush1.msra.mxu0 %v168
    %191 = vmatprep.subr.mxu0 0.0
    %192 = vmatpush1.msra.mxu0 %v169
    %193 = vmatprep.subr.mxu0 0.0
    %194 = vmatpush1.msra.mxu0 %v170
    %195 = vmatprep.subr.mxu0 0.0
    %196 = vmatpush1.msra.mxu0 %v171
    %197 = vmatprep.subr.mxu0 0.0
    %198 = vmatpush1.msra.mxu0 %v172
    %199 = vmatprep.subr.mxu0 0.0
    %200 = vmatpush1.msra.mxu0 %v173
    %201 = vmatprep.subr.mxu0 0.0
    %202 = vmatpush1.msra.mxu0 %v174
    %203 = vmatprep.subr.mxu0 0.0
    %204 = vmatpush1.msra.mxu0 %v175
    %205 = vmatprep.subr.mxu0 0.0
    %206 = vmatpush1.msra.mxu0 %v176
    %207 = vmatprep.subr.mxu0 0.0
    %208 = vmatpush1.msra.mxu0 %v177
    %209 = vmatprep.subr.mxu0 0.0
    %210 = vmatpush1.msra.mxu0 %v178
    %211 = vmatprep.subr.mxu0 0.0
    %212 = vmatpush1.msra.mxu0 0.0
    %213 = vmatprep.subr.mxu0 0.0
    %214 = vmatpush1.msra.mxu0 0.0
    %215 = vmatprep.subr.mxu0 0.0
    %216 = vmatpush1.msra.mxu0 0.0
    %217 = vmatprep.subr.mxu0 0.0
    %218 = vmatpush1.msra.mxu0 0.0
    %219 = vmatprep.subr.mxu0 0.0
    %220 = vmatpush1.msra.mxu0 0.0
    %221 = vmatprep.subr.mxu0 0.0
    %222 = vmatpush1.msra.mxu0 0.0
    %223 = vmatprep.subr.mxu0 0.0
    %224 = vmatpush1.msra.mxu0 0.0
    %225 = vmatprep.subr.mxu0 0.0
    %226 = vmatpush1.msra.mxu0 0.0
    %227 = vmatprep.subr.mxu0 0.0
    %228 = vmatpush1.msra.mxu0 0.0
    %229 = vmatprep.subr.mxu0 0.0
    %230 = vmatpush1.msra.mxu0 0.0
    %231 = vmatprep.subr.mxu0 0.0
    %232 = vmatpush1.msra.mxu0 0.0
    %233 = vmatprep.subr.mxu0 0.0
    %234 = vmatpush1.msra.mxu0 0.0
    %235 = vmatprep.subr.mxu0 0.0
    %236 = vmatpush1.msra.mxu0 0.0
    %237 = vmatprep.subr.mxu0 0.0
    %238 = vmatpush1.msra.mxu0 0.0
    %239 = vmatprep.subr.mxu0 0.0
    %240 = vmatpush1.msra.mxu0 0.0
    %241 = vmatprep.subr.mxu0 0.0
    %242 = vmatpush1.msra.mxu0 0.0
    %243 = vmatprep.mubr.f32.mxu0 0.0
    %244 = vmatmul.mubr.f32.gmra.mrb[0].mxu0 %v131
    %v245 = vpop.f32.mrb[0].mxu0
    %v246 = vadd.f32 0.0, %v245
    %v247 = vpop.f32.mrb[0].mxu0
    %248 = vmatprep.mubr.f32.mxu0 0.0
    %249 = vmatmul.mubr.f32.gmra.mrb[0].mxu0 %v132
    %v250 = vpop.f32.mrb[0].mxu0
    %v251 = vadd.f32 0.0, %v250
    %v252 = vpop.f32.mrb[0].mxu0
    %253 = vmatprep.mubr.f32.mxu0 0.0
    %254 = vmatmul.mubr.f32.gmra.mrb[0].mxu0 %v133
    %v255 = vpop.f32.mrb[0].mxu0
    %v256 = vadd.f32 0.0, %v255
    %v257 = vpop.f32.mrb[0].mxu0
    %258 = vmatprep.mubr.f32.mxu0 0.0
    %259 = vmatmul.mubr.f32.gmra.mrb[0].mxu0 %v134
    %v260 = vpop.f32.mrb[0].mxu0
    %v261 = vadd.f32 0.0, %v260
    %v262 = vpop.f32.mrb[0].mxu0
    %263 = vmatprep.mubr.f32.mxu0 0.0
    %264 = vmatmul.mubr.f32.gmra.mrb[0].mxu0 %v135
    %v265 = vpop.f32.mrb[0].mxu0
    %v266 = vadd.f32 0.0, %v265
    %v267 = vpop.f32.mrb[0].mxu0
    %268 = vmatprep.mubr.f32.mxu0 0.0
    %269 = vmatmul.mubr.f32.gmra.mrb[0].mxu0 %v136
    %v270 = vpop.f32.mrb[0].mxu0
    %v271 = vadd.f32 0.0, %v270
    %v272 = vpop.f32.mrb[0].mxu0
    %273 = vmatprep.mubr.f32.mxu0 0.0
    %274 = vmatmul.mubr.f32.gmra.mrb[0].mxu0 %v137
    %v275 = vpop.f32.mrb[0].mxu0
    %v276 = vadd.f32 0.0, %v275
    %v277 = vpop.f32.mrb[0].mxu0
    %278 = vmatprep.mubr.f32.mxu0 0.0
    %279 = vmatmul.mubr.f32.gmra.mrb[0].mxu0 %v138
    %v280 = vpop.f32.mrb[0].mxu0
    %v281 = vadd.f32 0.0, %v280
    %v282 = vpop.f32.mrb[0].mxu0
    %283 = vmatprep.mubr.f32.mxu0 0.0
    %284 = vmatmul.mubr.f32.gmra.mrb[0].mxu0 %v139
    %v285 = vpop.f32.mrb[0].mxu0
    %v286 = vadd.f32 0.0, %v285
    %v287 = vpop.f32.mrb[0].mxu0
    %288 = vmatprep.mubr.f32.mxu0 0.0
    %289 = vmatmul.mubr.f32.gmra.mrb[0].mxu0 %v140
    %v290 = vpop.f32.mrb[0].mxu0
    %v291 = vadd.f32 0.0, %v290
    %v292 = vpop.f32.mrb[0].mxu0
    %293 = vmatprep.mubr.f32.mxu0 0.0
    %294 = vmatmul.mubr.f32.gmra.mrb[0].mxu0 %v141
    %v295 = vpop.f32.mrb[0].mxu0
    %v296 = vadd.f32 0.0, %v295
    %v297 = vpop.f32.mrb[0].mxu0
    %298 = vmatprep.mubr.f32.mxu0 0.0
    %299 = vmatmul.mubr.f32.gmra.mrb[0].mxu0 %v142
    %v300 = vpop.f32.mrb[0].mxu0
    %v301 = vadd.f32 0.0, %v300
    %v302 = vpop.f32.mrb[0].mxu0
    %303 = vmatprep.mubr.f32.mxu0 0.0
    %304 = vmatmul.mubr.f32.gmra.mrb[0].mxu0 %v143
    %v305 = vpop.f32.mrb[0].mxu0
    %v306 = vadd.f32 0.0, %v305
    %v307 = vpop.f32.mrb[0].mxu0
    %308 = vmatprep.mubr.f32.mxu0 0.0
    %309 = vmatmul.mubr.f32.gmra.mrb[0].mxu0 %v144
    %v310 = vpop.f32.mrb[0].mxu0
    %v311 = vadd.f32 0.0, %v310
    %v312 = vpop.f32.mrb[0].mxu0
    %313 = vmatprep.mubr.f32.mxu0 0.0
    %314 = vmatmul.mubr.f32.gmra.mrb[0].mxu0 %v145
    %v315 = vpop.f32.mrb[0].mxu0
    %v316 = vadd.f32 0.0, %v315
    %v317 = vpop.f32.mrb[0].mxu0
    %318 = vmatprep.mubr.f32.mxu0 0.0
    %319 = vmatmul.mubr.f32.gmra.mrb[0].mxu0 %v146
    %v320 = vpop.f32.mrb[0].mxu0
    %v321 = vadd.f32 0.0, %v320
    %v322 = vpop.f32.mrb[0].mxu0
    %323 = vmatprep.mubr.f32.mxu0 0.0
    %324 = vmatmul.mubr.f32.gmra.mrb[0].mxu0 %v147
    %v325 = vpop.f32.mrb[0].mxu0
    %v326 = vadd.f32 0.0, %v325
    %v327 = vpop.f32.mrb[0].mxu0
    %328 = vmatprep.mubr.f32.mxu0 0.0
    %329 = vmatmul.mubr.f32.gmra.mrb[0].mxu0 %v148
    %v330 = vpop.f32.mrb[0].mxu0
    %v331 = vadd.f32 0.0, %v330
    %v332 = vpop.f32.mrb[0].mxu0
    %333 = vmatprep.mubr.f32.mxu0 0.0
    %334 = vmatmul.mubr.f32.gmra.mrb[0].mxu0 %v149
    %v335 = vpop.f32.mrb[0].mxu0
    %v336 = vadd.f32 0.0, %v335
    %v337 = vpop.f32.mrb[0].mxu0
    %338 = vmatprep.mubr.f32.mxu0 0.0
    %339 = vmatmul.mubr.f32.gmra.mrb[0].mxu0 %v150
    %v340 = vpop.f32.mrb[0].mxu0
    %v341 = vadd.f32 0.0, %v340
    %v342 = vpop.f32.mrb[0].mxu0
    %343 = vmatprep.mubr.f32.mxu0 0.0
    %344 = vmatmul.mubr.f32.gmra.mrb[0].mxu0 %v151
    %v345 = vpop.f32.mrb[0].mxu0
    %v346 = vadd.f32 0.0, %v345
    %v347 = vpop.f32.mrb[0].mxu0
    %348 = vmatprep.mubr.f32.mxu0 0.0
    %349 = vmatmul.mubr.f32.gmra.mrb[0].mxu0 %v152
    %v350 = vpop.f32.mrb[0].mxu0
    %v351 = vadd.f32 0.0, %v350
    %v352 = vpop.f32.mrb[0].mxu0
    %353 = vmatprep.mubr.f32.mxu0 0.0
    %354 = vmatmul.mubr.f32.gmra.mrb[0].mxu0 %v153
    %v355 = vpop.f32.mrb[0].mxu0
    %v356 = vadd.f32 0.0, %v355
    %v357 = vpop.f32.mrb[0].mxu0
    %358 = vmatprep.mubr.f32.mxu0 0.0
    %359 = vmatmul.mubr.f32.gmra.mrb[0].mxu0 %v154
    %v360 = vpop.f32.mrb[0].mxu0
    %v361 = vadd.f32 0.0, %v360
    %v362 = vpop.f32.mrb[0].mxu0
    %363 = vmatprep.mubr.f32.mxu0 0.0
    %364 = vmatmul.mubr.f32.gmra.mrb[0].mxu0 %v155
    %v365 = vpop.f32.mrb[0].mxu0
    %v366 = vadd.f32 0.0, %v365
    %v367 = vpop.f32.mrb[0].mxu0
    %368 = vmatprep.mubr.f32.mxu0 0.0
    %369 = vmatmul.mubr.f32.gmra.mrb[0].mxu0 %v156
    %v370 = vpop.f32.mrb[0].mxu0
    %v371 = vadd.f32 0.0, %v370
    %v372 = vpop.f32.mrb[0].mxu0
    %373 = vmatprep.mubr.f32.mxu0 0.0
    %374 = vmatmul.mubr.f32.gmra.mrb[0].mxu0 %v157
    %v375 = vpop.f32.mrb[0].mxu0
    %v376 = vadd.f32 0.0, %v375
    %v377 = vpop.f32.mrb[0].mxu0
    %378 = vmatprep.mubr.f32.mxu0 0.0
    %379 = vmatmul.mubr.f32.gmra.mrb[0].mxu0 %v158
    %v380 = vpop.f32.mrb[0].mxu0
    %v381 = vadd.f32 0.0, %v380
    %v382 = vpop.f32.mrb[0].mxu0
    %383 = vmatprep.mubr.f32.mxu0 0.0
    %384 = vmatmul.mubr.f32.gmra.mrb[0].mxu0 %v159
    %v385 = vpop.f32.mrb[0].mxu0
    %v386 = vadd.f32 0.0, %v385
    %v387 = vpop.f32.mrb[0].mxu0
    %388 = vmatprep.mubr.f32.mxu0 0.0
    %389 = vmatmul.mubr.f32.gmra.mrb[0].mxu0 %v160
    %v390 = vpop.f32.mrb[0].mxu0
    %v391 = vadd.f32 0.0, %v390
    %v392 = vpop.f32.mrb[0].mxu0
    %393 = vmatprep.mubr.f32.mxu0 0.0
    %394 = vmatmul.mubr.f32.gmra.mrb[0].mxu0 %v161
    %v395 = vpop.f32.mrb[0].mxu0
    %v396 = vadd.f32 0.0, %v395
    %v397 = vpop.f32.mrb[0].mxu0
    %398 = vmatprep.mubr.f32.mxu0 0.0
    %399 = vmatmul.mubr.f32.gmra.mrb[0].mxu0 %v162
    %v400 = vpop.f32.mrb[0].mxu0
    %v401 = vadd.f32 0.0, %v400
    %v402 = vpop.f32.mrb[0].mxu0
    %403 = vdwg.mxu0
    %404 = vmatprep.subr.mxu0 0.0
    %405 = vmatpush1.msra.mxu0 %v115
    %406 = vmatprep.subr.mxu0 0.0
    %407 = vmatpush1.msra.mxu0 %v116
    %408 = vmatprep.subr.mxu0 0.0
    %409 = vmatpush1.msra.mxu0 %v117
    %410 = vmatprep.subr.mxu0 0.0
    %411 = vmatpush1.msra.mxu0 %v118
    %412 = vmatprep.subr.mxu0 0.0
    %413 = vmatpush1.msra.mxu0 %v119
    %414 = vmatprep.subr.mxu0 0.0
    %415 = vmatpush1.msra.mxu0 %v120
    %416 = vmatprep.subr.mxu0 0.0
    %417 = vmatpush1.msra.mxu0 %v121
    %418 = vmatprep.subr.mxu0 0.0
    %419 = vmatpush1.msra.mxu0 %v122
    %420 = vmatprep.subr.mxu0 0.0
    %421 = vmatpush1.msra.mxu0 %v123
    %422 = vmatprep.subr.mxu0 0.0
    %423 = vmatpush1.msra.mxu0 %v124
    %424 = vmatprep.subr.mxu0 0.0
    %425 = vmatpush1.msra.mxu0 %v125
    %426 = vmatprep.subr.mxu0 0.0
    %427 = vmatpush1.msra.mxu0 %v126
    %428 = vmatprep.subr.mxu0 0.0
    %429 = vmatpush1.msra.mxu0 %v127
    %430 = vmatprep.subr.mxu0 0.0
    %431 = vmatpush1.msra.mxu0 %v128
    %432 = vmatprep.subr.mxu0 0.0
    %433 = vmatpush1.msra.mxu0 %v129
    %434 = vmatprep.subr.mxu0 0.0
    %435 = vmatpush1.msra.mxu0 %v130
    %436 = vmatprep.subr.mxu0 0.0
    %437 = vmatpush1.msra.mxu0 0.0
    %438 = vmatprep.subr.mxu0 0.0
    %439 = vmatpush1.msra.mxu0 0.0
    %440 = vmatprep.subr.mxu0 0.0
    %441 = vmatpush1.msra.mxu0 0.0
    %442 = vmatprep.subr.mxu0 0.0
    %443 = vmatpush1.msra.mxu0 0.0
    %444 = vmatprep.subr.mxu0 0.0
    %445 = vmatpush1.msra.mxu0 0.0
    %446 = vmatprep.subr.mxu0 0.0
    %447 = vmatpush1.msra.mxu0 0.0
    %448 = vmatprep.subr.mxu0 0.0
    %449 = vmatpush1.msra.mxu0 0.0
    %450 = vmatprep.subr.mxu0 0.0
    %451 = vmatpush1.msra.mxu0 0.0
    %452 = vmatprep.subr.mxu0 0.0
    %453 = vmatpush1.msra.mxu0 0.0
    %454 = vmatprep.subr.mxu0 0.0
    %455 = vmatpush1.msra.mxu0 0.0
    %456 = vmatprep.subr.mxu0 0.0
    %457 = vmatpush1.msra.mxu0 0.0
    %458 = vmatprep.subr.mxu0 0.0
    %459 = vmatpush1.msra.mxu0 0.0
    %460 = vmatprep.subr.mxu0 0.0
    %461 = vmatpush1.msra.mxu0 0.0
    %462 = vmatprep.subr.mxu0 0.0
    %463 = vmatpush1.msra.mxu0 0.0
    %464 = vmatprep.subr.mxu0 0.0
    %465 = vmatpush1.msra.mxu0 0.0
    %466 = vmatprep.subr.mxu0 0.0
    %467 = vmatpush1.msra.mxu0 0.0
    %468 = vmatprep.mubr.f32.mxu0 0.0
    %469 = vmatmul.mubr.f32.gmra.mrb[0].mxu0 %v83
    %v470 = vpop.f32.mrb[0].mxu0
    %v471 = vadd.f32 %v246, %v470
    %v472 = vpop.f32.mrb[0].mxu0
    %473 = vmatprep.mubr.f32.mxu0 0.0
    %474 = vmatmul.mubr.f32.gmra.mrb[0].mxu0 %v84
    %v475 = vpop.f32.mrb[0].mxu0
    %v476 = vadd.f32 %v251, %v475
    %v477 = vpop.f32.mrb[0].mxu0
    %478 = vmatprep.mubr.f32.mxu0 0.0
    %479 = vmatmul.mubr.f32.gmra.mrb[0].mxu0 %v85
    %v480 = vpop.f32.mrb[0].mxu0
    %v481 = vadd.f32 %v256, %v480
    %v482 = vpop.f32.mrb[0].mxu0
    %483 = vmatprep.mubr.f32.mxu0 0.0
    %484 = vmatmul.mubr.f32.gmra.mrb[0].mxu0 %v86
    %v485 = vpop.f32.mrb[0].mxu0
    %v486 = vadd.f32 %v261, %v485
    %v487 = vpop.f32.mrb[0].mxu0
    %488 = vmatprep.mubr.f32.mxu0 0.0
    %489 = vmatmul.mubr.f32.gmra.mrb[0].mxu0 %v87
    %v490 = vpop.f32.mrb[0].mxu0
    %v491 = vadd.f32 %v266, %v490
    %v492 = vpop.f32.mrb[0].mxu0
    %493 = vmatprep.mubr.f32.mxu0 0.0
    %494 = vmatmul.mubr.f32.gmra.mrb[0].mxu0 %v88
    %v495 = vpop.f32.mrb[0].mxu0
    %v496 = vadd.f32 %v271, %v495
    %v497 = vpop.f32.mrb[0].mxu0
    %498 = vmatprep.mubr.f32.mxu0 0.0
    %499 = vmatmul.mubr.f32.gmra.mrb[0].mxu0 %v89
    %v500 = vpop.f32.mrb[0].mxu0
    %v501 = vadd.f32 %v276, %v500
    %v502 = vpop.f32.mrb[0].mxu0
    %503 = vmatprep.mubr.f32.mxu0 0.0
    %504 = vmatmul.mubr.f32.gmra.mrb[0].mxu0 %v90
    %v505 = vpop.f32.mrb[0].mxu0
    %v506 = vadd.f32 %v281, %v505
    %v507 = vpop.f32.mrb[0].mxu0
    %508 = vmatprep.mubr.f32.mxu0 0.0
    %509 = vmatmul.mubr.f32.gmra.mrb[0].mxu0 %v91
    %v510 = vpop.f32.mrb[0].mxu0
    %v511 = vadd.f32 %v286, %v510
    %v512 = vpop.f32.mrb[0].mxu0
    %513 = vmatprep.mubr.f32.mxu0 0.0
    %514 = vmatmul.mubr.f32.gmra.mrb[0].mxu0 %v92
    %v515 = vpop.f32.mrb[0].mxu0
    %v516 = vadd.f32 %v291, %v515
    %v517 = vpop.f32.mrb[0].mxu0
    %518 = vmatprep.mubr.f32.mxu0 0.0
    %519 = vmatmul.mubr.f32.gmra.mrb[0].mxu0 %v93
    %v520 = vpop.f32.mrb[0].mxu0
    %v521 = vadd.f32 %v296, %v520
    %v522 = vpop.f32.mrb[0].mxu0
    %523 = vmatprep.mubr.f32.mxu0 0.0
    %524 = vmatmul.mubr.f32.gmra.mrb[0].mxu0 %v94
    %v525 = vpop.f32.mrb[0].mxu0
    %v526 = vadd.f32 %v301, %v525
    %v527 = vpop.f32.mrb[0].mxu0
    %528 = vmatprep.mubr.f32.mxu0 0.0
    %529 = vmatmul.mubr.f32.gmra.mrb[0].mxu0 %v95
    %v530 = vpop.f32.mrb[0].mxu0
    %v531 = vadd.f32 %v306, %v530
    %v532 = vpop.f32.mrb[0].mxu0
    %533 = vmatprep.mubr.f32.mxu0 0.0
    %534 = vmatmul.mubr.f32.gmra.mrb[0].mxu0 %v96
    %v535 = vpop.f32.mrb[0].mxu0
    %v536 = vadd.f32 %v311, %v535
    %v537 = vpop.f32.mrb[0].mxu0
    %538 = vmatprep.mubr.f32.mxu0 0.0
    %539 = vmatmul.mubr.f32.gmra.mrb[0].mxu0 %v97
    %v540 = vpop.f32.mrb[0].mxu0
    %v541 = vadd.f32 %v316, %v540
    %v542 = vpop.f32.mrb[0].mxu0
    %543 = vmatprep.mubr.f32.mxu0 0.0
    %544 = vmatmul.mubr.f32.gmra.mrb[0].mxu0 %v98
    %v545 = vpop.f32.mrb[0].mxu0
    %v546 = vadd.f32 %v321, %v545
    %v547 = vpop.f32.mrb[0].mxu0
    %548 = vmatprep.mubr.f32.mxu0 0.0
    %549 = vmatmul.mubr.f32.gmra.mrb[0].mxu0 %v99
    %v550 = vpop.f32.mrb[0].mxu0
    %v551 = vadd.f32 %v326, %v550
    %v552 = vpop.f32.mrb[0].mxu0
    %553 = vmatprep.mubr.f32.mxu0 0.0
    %554 = vmatmul.mubr.f32.gmra.mrb[0].mxu0 %v100
    %v555 = vpop.f32.mrb[0].mxu0
    %v556 = vadd.f32 %v331, %v555
    %v557 = vpop.f32.mrb[0].mxu0
    %558 = vmatprep.mubr.f32.mxu0 0.0
    %559 = vmatmul.mubr.f32.gmra.mrb[0].mxu0 %v101
    %v560 = vpop.f32.mrb[0].mxu0
    %v561 = vadd.f32 %v336, %v560
    %v562 = vpop.f32.mrb[0].mxu0
    %563 = vmatprep.mubr.f32.mxu0 0.0
    %564 = vmatmul.mubr.f32.gmra.mrb[0].mxu0 %v102
    %v565 = vpop.f32.mrb[0].mxu0
    %v566 = vadd.f32 %v341, %v565
    %v567 = vpop.f32.mrb[0].mxu0
    %568 = vmatprep.mubr.f32.mxu0 0.0
    %569 = vmatmul.mubr.f32.gmra.mrb[0].mxu0 %v103
    %v570 = vpop.f32.mrb[0].mxu0
    %v571 = vadd.f32 %v346, %v570
    %v572 = vpop.f32.mrb[0].mxu0
    %573 = vmatprep.mubr.f32.mxu0 0.0
    %574 = vmatmul.mubr.f32.gmra.mrb[0].mxu0 %v104
    %v575 = vpop.f32.mrb[0].mxu0
    %v576 = vadd.f32 %v351, %v575
    %v577 = vpop.f32.mrb[0].mxu0
    %578 = vmatprep.mubr.f32.mxu0 0.0
    %579 = vmatmul.mubr.f32.gmra.mrb[0].mxu0 %v105
    %v580 = vpop.f32.mrb[0].mxu0
    %v581 = vadd.f32 %v356, %v580
    %v582 = vpop.f32.mrb[0].mxu0
    %583 = vmatprep.mubr.f32.mxu0 0.0
    %584 = vmatmul.mubr.f32.gmra.mrb[0].mxu0 %v106
    %v585 = vpop.f32.mrb[0].mxu0
    %v586 = vadd.f32 %v361, %v585
    %v587 = vpop.f32.mrb[0].mxu0
    %588 = vmatprep.mubr.f32.mxu0 0.0
    %589 = vmatmul.mubr.f32.gmra.mrb[0].mxu0 %v107
    %v590 = vpop.f32.mrb[0].mxu0
    %v591 = vadd.f32 %v366, %v590
    %v592 = vpop.f32.mrb[0].mxu0
    %593 = vmatprep.mubr.f32.mxu0 0.0
    %594 = vmatmul.mubr.f32.gmra.mrb[0].mxu0 %v108
    %v595 = vpop.f32.mrb[0].mxu0
    %v596 = vadd.f32 %v371, %v595
    %v597 = vpop.f32.mrb[0].mxu0
    %598 = vmatprep.mubr.f32.mxu0 0.0
    %599 = vmatmul.mubr.f32.gmra.mrb[0].mxu0 %v109
    %v600 = vpop.f32.mrb[0].mxu0
    %v601 = vadd.f32 %v376, %v600
    %v602 = vpop.f32.mrb[0].mxu0
    %603 = vmatprep.mubr.f32.mxu0 0.0
    %604 = vmatmul.mubr.f32.gmra.mrb[0].mxu0 %v110
    %v605 = vpop.f32.mrb[0].mxu0
    %v606 = vadd.f32 %v381, %v605
    %v607 = vpop.f32.mrb[0].mxu0
    %608 = vmatprep.mubr.f32.mxu0 0.0
    %609 = vmatmul.mubr.f32.gmra.mrb[0].mxu0 %v111
    %v610 = vpop.f32.mrb[0].mxu0
    %v611 = vadd.f32 %v386, %v610
    %v612 = vpop.f32.mrb[0].mxu0
    %613 = vmatprep.mubr.f32.mxu0 0.0
    %614 = vmatmul.mubr.f32.gmra.mrb[0].mxu0 %v112
    %v615 = vpop.f32.mrb[0].mxu0
    %v616 = vadd.f32 %v391, %v615
    %v617 = vpop.f32.mrb[0].mxu0
    %618 = vmatprep.mubr.f32.mxu0 0.0
    %619 = vmatmul.mubr.f32.gmra.mrb[0].mxu0 %v113
    %v620 = vpop.f32.mrb[0].mxu0
    %v621 = vadd.f32 %v396, %v620
    %v622 = vpop.f32.mrb[0].mxu0
    %623 = vmatprep.mubr.f32.mxu0 0.0
    %624 = vmatmul.mubr.f32.gmra.mrb[0].mxu0 %v114
    %v625 = vpop.f32.mrb[0].mxu0
    %v626 = vadd.f32 %v401, %v625
    %v627 = vpop.f32.mrb[0].mxu0
    %628 = vdwg.mxu0
    %v629 = vld [vmem:[%s4] sm:$0x1]
    %v631 = vlaneseq
    %v632 = vshrl.u32 %v631, 7
    %v633 = vsub.s32 0, %v632
    %v634 = vrot.slane %v629, %v633
    %v636 = vadd.f32 %v471, %v634
    %v637 = vadd.f32 %v476, %v634
    %v638 = vadd.f32 %v481, %v634
    %v639 = vadd.f32 %v486, %v634
    %v640 = vadd.f32 %v491, %v634
    %v641 = vadd.f32 %v496, %v634
    %v642 = vadd.f32 %v501, %v634
    %v643 = vadd.f32 %v506, %v634
    %v644 = vadd.f32 %v511, %v634
    %v645 = vadd.f32 %v516, %v634
    %v646 = vadd.f32 %v521, %v634
    %v647 = vadd.f32 %v526, %v634
    %v648 = vadd.f32 %v531, %v634
    %v649 = vadd.f32 %v536, %v634
    %v650 = vadd.f32 %v541, %v634
    %v651 = vadd.f32 %v546, %v634
    %v652 = vadd.f32 %v551, %v634
    %v653 = vadd.f32 %v556, %v634
    %v654 = vadd.f32 %v561, %v634
    %v655 = vadd.f32 %v566, %v634
    %v656 = vadd.f32 %v571, %v634
    %v657 = vadd.f32 %v576, %v634
    %v658 = vadd.f32 %v581, %v634
    %v659 = vadd.f32 %v586, %v634
    %v660 = vadd.f32 %v591, %v634
    %v661 = vadd.f32 %v596, %v634
    %v662 = vadd.f32 %v601, %v634
    %v663 = vadd.f32 %v606, %v634
    %v664 = vadd.f32 %v611, %v634
    %v665 = vadd.f32 %v616, %v634
    %v666 = vadd.f32 %v621, %v634
    %v667 = vadd.f32 %v626, %v634
    %v668 = vtanh.pop %v636
    %v669 = vtanh.pop %v637
    %v670 = vtanh.pop %v638
    %v671 = vtanh.pop %v639
    %v672 = vtanh.pop %v640
    %v673 = vtanh.pop %v641
    %v674 = vtanh.pop %v642
    %v675 = vtanh.pop %v643
    %v676 = vtanh.pop %v644
    %v677 = vtanh.pop %v645
    %v678 = vtanh.pop %v646
    %v679 = vtanh.pop %v647
    %v680 = vtanh.pop %v648
    %v681 = vtanh.pop %v649
    %v682 = vtanh.pop %v650
    %v683 = vtanh.pop %v651
    %v684 = vtanh.pop %v652
    %v685 = vtanh.pop %v653
    %v686 = vtanh.pop %v654
    %v687 = vtanh.pop %v655
    %v688 = vtanh.pop %v656
    %v689 = vtanh.pop %v657
    %v690 = vtanh.pop %v658
    %v691 = vtanh.pop %v659
    %v692 = vtanh.pop %v660
    %v693 = vtanh.pop %v661
    %v694 = vtanh.pop %v662
    %v695 = vtanh.pop %v663
    %v696 = vtanh.pop %v664
    %v697 = vtanh.pop %v665
    %v698 = vtanh.pop %v666
    %v699 = vtanh.pop %v667
    %v700 = vld [vmem:[%s5] sm:$0x1]
    %s701 = sld [smem:[#allocation2]]
    %v702 = vstv %s701
    %703 = vmatprep.subr.mxu0 0.0
    %704 = vmatpush1.xpose.msra.mxu0 %v668
    %705 = vmatprep.subr.mxu0 0.0
    %706 = vmatpush1.xpose.msra.mxu0 %v669
    %707 = vmatprep.subr.mxu0 0.0
    %708 = vmatpush1.xpose.msra.mxu0 %v670
    %709 = vmatprep.subr.mxu0 0.0
    %710 = vmatpush1.xpose.msra.mxu0 %v671
    %711 = vmatprep.subr.mxu0 0.0
    %712 = vmatpush1.xpose.msra.mxu0 %v672
    %713 = vmatprep.subr.mxu0 0.0
    %714 = vmatpush1.xpose.msra.mxu0 %v673
    %715 = vmatprep.subr.mxu0 0.0
    %716 = vmatpush1.xpose.msra.mxu0 %v674
    %717 = vmatprep.subr.mxu0 0.0
    %718 = vmatpush1.xpose.msra.mxu0 %v675
    %719 = vmatprep.subr.mxu0 0.0
    %720 = vmatpush1.xpose.msra.mxu0 %v676
    %721 = vmatprep.subr.mxu0 0.0
    %722 = vmatpush1.xpose.msra.mxu0 %v677
    %723 = vmatprep.subr.mxu0 0.0
    %724 = vmatpush1.xpose.msra.mxu0 %v678
    %725 = vmatprep.subr.mxu0 0.0
    %726 = vmatpush1.xpose.msra.mxu0 %v679
    %727 = vmatprep.subr.mxu0 0.0
    %728 = vmatpush1.xpose.msra.mxu0 %v680
    %729 = vmatprep.subr.mxu0 0.0
    %730 = vmatpush1.xpose.msra.mxu0 %v681
    %731 = vmatprep.subr.mxu0 0.0
    %732 = vmatpush1.xpose.msra.mxu0 %v682
    %733 = vmatprep.subr.mxu0 0.0
    %734 = vmatpush1.xpose.msra.mxu0 %v683
    %735 = vmatprep.subr.mxu0 0.0
    %736 = vmatpush1.xpose.msra.mxu0 %v684
    %737 = vmatprep.subr.mxu0 0.0
    %738 = vmatpush1.xpose.msra.mxu0 %v685
    %739 = vmatprep.subr.mxu0 0.0
    %740 = vmatpush1.xpose.msra.mxu0 %v686
    %741 = vmatprep.subr.mxu0 0.0
    %742 = vmatpush1.xpose.msra.mxu0 %v687
    %743 = vmatprep.subr.mxu0 0.0
    %744 = vmatpush1.xpose.msra.mxu0 %v688
    %745 = vmatprep.subr.mxu0 0.0
    %746 = vmatpush1.xpose.msra.mxu0 %v689
    %747 = vmatprep.subr.mxu0 0.0
    %748 = vmatpush1.xpose.msra.mxu0 %v690
    %749 = vmatprep.subr.mxu0 0.0
    %750 = vmatpush1.xpose.msra.mxu0 %v691
    %751 = vmatprep.subr.mxu0 0.0
    %752 = vmatpush1.xpose.msra.mxu0 %v692
    %753 = vmatprep.subr.mxu0 0.0
    %754 = vmatpush1.xpose.msra.mxu0 %v693
    %755 = vmatprep.subr.mxu0 0.0
    %756 = vmatpush1.xpose.msra.mxu0 %v694
    %757 = vmatprep.subr.mxu0 0.0
    %758 = vmatpush1.xpose.msra.mxu0 %v695
    %759 = vmatprep.subr.mxu0 0.0
    %760 = vmatpush1.xpose.msra.mxu0 %v696
    %761 = vmatprep.subr.mxu0 0.0
    %762 = vmatpush1.xpose.msra.mxu0 %v697
    %763 = vmatprep.subr.mxu0 0.0
    %764 = vmatpush1.xpose.msra.mxu0 %v698
    %765 = vmatprep.subr.mxu0 0.0
    %766 = vmatpush1.xpose.msra.mxu0 %v699
    %767 = vmatprep.mubr.f32.mxu0 0.0
    %768 = vmatmul.mubr.f32.gmra.mrb[0].mxu0 %v700
    %v769 = vpop.f32.mrb[0].mxu0
    %v770 = vadd.f32 %v702, %v769
    %v771 = vpop.f32.mrb[0].mxu0
    %v772 = vadd.f32 %v702, %v771
    %773 = vdwg.mxu0
    %v774 = vxor.u32 %v770, 2147483648
    %v775 = vxor.u32 %v772, 2147483648
    %v776 = vmul.f32 %v774, 1.442695
    %v777 = vpow.pop %v776
    %v778 = vmul.f32 %v775, 1.442695
    %v779 = vpow.pop %v778
    %v780 = vadd.f32 %v777, 1.0
    %v781 = vadd.f32 %v779, 1.0
    %v782 = vrcp.pop %v780
    %v783 = vmul.f32 1.0, %v782
    %v784 = vrcp.pop %v781
    %v785 = vmul.f32 1.0, %v784
    %v788 = vcombine.low %v783, %v785
    %v790 = vunpack.c.l.s4 1966171168
    %v791 = vunpack.c.0.s8 %v790
    %v792 = vlaneseq
    %v793 = vshrl.u32 %v792, 7
    %v794 = vsub.s32 %v791, %v793
    %v795 = vrot.slane %v788, %v794
    %v797 = vunpack.c.l.s4 1966171168
    %v798 = vunpack.c.0.s8 %v797
    %v799 = vlaneseq
    %v800 = vshrl.u32 %v799, 7
    %v801 = vsub.s32 %v798, %v800
    %v802 = vrot.slane %v795, %v801
    %v804 = vlaneseq
    %vm805 = vcmp.ge.s32.totalorder %v804, 0
    %vm806 = vcmp.lt.s32.totalorder %v804, 256
    %vm807 = vmand %vm805, %vm806
    %808 = vst.msk [vmem:[#allocation11] sm:$0x3] %vm807, %v802
    // Predicated region
    $region46: #{scorer_forward.1} parent=1 // pred_check
      _
    $region47: #{scorer_forward.1} parent=1 // pred_check_branch
      %810 = sbr.rel (0) target = $region49
    $region48: #{scorer_forward.1} parent=1 // pred_region
      %s812 = ssub.s32 32, 32
      %813 = vsyncadd [#allocation5], %s812
      %s815 = sshll.u32 [#allocation11], 4
      %s816 = int_to_ptr.vmem [resolvable:$true] %s815
      %818 = dma.vmem_to_hbm [thread:$0]  %s816, 32, %s7, [#allocation5]
    $region49: #{scorer_forward.1} parent=1 // pred_fallthru
      _
    // Predicated region
    $region50: #{scorer_forward.1} parent=1 // pred_check
      _
    $region51: #{scorer_forward.1} parent=1 // pred_check_branch
      %820 = sbr.rel (0) target = $region53
    $region52: #{scorer_forward.1} parent=1 // pred_region
      %821 = dma.done [#allocation5], 32
    $region53: #{scorer_forward.1} parent=1 // pred_fallthru
      _
    %822 = vsyncpa [#allocation4], 1
    %823 = vsyncpa [#allocation7], 1
    %824 = vsyncpa [#allocation10], 1
    %825 = vsyncpa [#allocation5], 1

</llo_original>
